<compile_context>
chip_gen: v6e
topology: v6e:2x2x1
jax: 0.10.0
libtpu: 0.0.40
codegen_flags: <defaults>
</compile_context>

<pallas_src>
import math
from functools import partial

import jax
import jax.numpy as jnp
from jax.experimental import pallas as pl
from jax.experimental.pallas import tpu as pltpu


# Deterministic "module parameters" (DeltaXYWHBBoxCoder target means / stds).
MEANS = (0.0, 0.0, 0.0, 0.0)
STDS = (0.1, 0.1, 0.2, 0.2)
WH_RATIO_CLIP = 16.0 / 1000.0

_LANES = 128
_MAX_TILE_ROWS = 512          # measured knee of the tile-size/roofline curve


def _cdiv(a, b):
    return -(-a // b)


def _round_up(a, m):
    return _cdiv(a, m) * m


# ----------------------------- fused kernel ---------------------------------
def _fused_kernel(s_ref, d_ref, a_ref, so_ref, po_ref, *,
                  use_sigmoid, means, stds, max_ratio, max_shape, clip_border):
    # s_ref : (C, TR, 128) raw scores for one (hw tile, anchor, batch) step
    # d_ref : (4, TR, 128) dx, dy, dw, dh planes
    # a_ref : (4, TR, 128) x1, y1, x2, y2 anchor planes

    # ---- score activation (dense full-vreg work; softmax reduces across the
    # ---- leading class-plane axis -> plain elementwise max/add, no XLU) ----
    x = s_ref[...].astype(jnp.float32)
    if use_sigmoid:
        act = 0.5 * jnp.tanh(0.5 * x) + 0.5          # sigmoid on the EUP slot
    else:
        m = jnp.max(x, axis=0, keepdims=True)
        e = jnp.exp(x - m)
        act = e * pl.reciprocal(jnp.sum(e, axis=0, keepdims=True), approx=False)
    so_ref[...] = act.astype(so_ref.dtype)

    # ---- delta -> bbox decode (every operand is a dense (TR, 128) plane) ---
    ax1 = a_ref[0, :, :].astype(jnp.float32)
    ay1 = a_ref[1, :, :].astype(jnp.float32)
    ax2 = a_ref[2, :, :].astype(jnp.float32)
    ay2 = a_ref[3, :, :].astype(jnp.float32)

    dx = d_ref[0, :, :].astype(jnp.float32) * stds[0] + means[0]
    dy = d_ref[1, :, :].astype(jnp.float32) * stds[1] + means[1]
    dw = d_ref[2, :, :].astype(jnp.float32) * stds[2] + means[2]
    dh = d_ref[3, :, :].astype(jnp.float32) * stds[3] + means[3]

    px = (ax1 + ax2) * 0.5
    py = (ay1 + ay2) * 0.5
    pw = ax2 - ax1
    ph = ay2 - ay1

    gx = px + pw * dx
    gy = py + ph * dy
    half_gw = pw * jnp.exp(jnp.clip(dw, -max_ratio, max_ratio)) * 0.5
    half_gh = ph * jnp.exp(jnp.clip(dh, -max_ratio, max_ratio)) * 0.5

    x1 = gx - half_gw
    y1 = gy - half_gh
    x2 = gx + half_gw
    y2 = gy + half_gh

    if clip_border and max_shape is not None:
        x1 = jnp.clip(x1, 0.0, max_shape[1] - 1.0)
        y1 = jnp.clip(y1, 0.0, max_shape[0] - 1.0)
        x2 = jnp.clip(x2, 0.0, max_shape[1] - 1.0)
        y2 = jnp.clip(y2, 0.0, max_shape[0] - 1.0)

    po_ref[0, :, :] = x1.astype(po_ref.dtype)       # dense full-tile stores
    po_ref[1, :, :] = y1.astype(po_ref.dtype)
    po_ref[2, :, :] = x2.astype(po_ref.dtype)
    po_ref[3, :, :] = y2.astype(po_ref.dtype)


# ----------------------------- wrapper ---------------------------------------
def delta_xywh_bbox_coder_forward(cls_scores, bbox_preds, anchors,
                                  min_num_bboxes, num_classes, use_sigmoid_cls,
                                  max_shape=None, planar_output=False):
    B, AC, H, W = cls_scores.shape
    C = int(num_classes)
    A = AC // C
    HW = H * W
    N = HW * A
    out_rows = max(N, int(min_num_bboxes))

    # ---- free reshapes: keep input dtype, no transpose -----------------------
    scores_r = cls_scores.reshape(B, A, C, HW)        # channel = a*C + c
    deltas_r = bbox_preds.reshape(B, A, 4, HW)        # channel = a*4 + k

    if anchors.ndim == 2:
        anchors = anchors[None]
    Ba = anchors.shape[0]
    assert Ba in (1, B), f"anchors batch {Ba} must be 1 or {B}"
    # anchors arrive in module order n = hw*A + a -> planar (Ba, A, 4, HW)
    anchors_r = jnp.transpose(anchors.reshape(Ba, HW, A, 4), (0, 2, 3, 1))

    # ---- tiling: per-generation VMEM budget, no tile-multiple over-padding ---
    def sub_mult(dt):                      # sublane multiple for tiled dims
        return 8 * max(1, 4 // jnp.dtype(dt).itemsize)
    mult = max(sub_mult(cls_scores.dtype), sub_mult(bbox_preds.dtype),
               sub_mult(anchors.dtype))

    vmem_phys = 64 << 20
    try:
        vmem_phys = pltpu.get_tpu_info().vmem_capacity_bytes
    except Exception:
        pass
    if vmem_phys >= (128 << 20):           # v5e / v6e: 128 MiB physical VMEM
        vmem_limit, budget = 64 << 20, 56 << 20
    else:                                  # v7x: 64 MiB physical VMEM per TC
        vmem_limit, budget = 48 << 20, 40 << 20

    s_b = jnp.dtype(cls_scores.dtype).itemsize
    d_b = jnp.dtype(bbox_preds.dtype).itemsize
    a_b = jnp.dtype(anchors.dtype).itemsize
    bytes_per_row = _LANES * 2 * (C * s_b + 4 * d_b + 4 * a_b + (C + 4) * 4)
    row_cap = max(mult, (budget // bytes_per_row) // mult * mult)
    row_cap = min(row_cap, _MAX_TILE_ROWS)

    nr = _cdiv(HW, _LANES)                 # hw rows needed per anchor
    if nr <= row_cap:
        n_tiles, tile_r = 1, nr            # full-dim block (no 8/16 constraint)
    else:
        n_tiles = _cdiv(nr, row_cap)
        tile_r = _round_up(_cdiv(nr, n_tiles), mult)
    nr_pad = tile_r * n_tiles
    hw_pad = nr_pad * _LANES

    def to_planes(x):                      # pad HW to lane multiple, reshape
        pad = hw_pad - HW
        if pad:
            x = jnp.pad(x, ((0, 0), (0, 0), (0, 0), (0, pad)))
        return x.reshape(x.shape[0], x.shape[1], x.shape[2], nr_pad, _LANES)

    scores_p = to_planes(scores_r)
    deltas_p = to_planes(deltas_r)
    anchors_p = to_planes(anchors_r)

    max_ratio = abs(math.log(WH_RATIO_CLIP))
    kernel = partial(_fused_kernel, use_sigmoid=bool(use_sigmoid_cls),
                     means=MEANS, stds=STDS, max_ratio=max_ratio,
                     max_shape=max_shape, clip_border=True)

    # grid = (hw_tiles, A, B): batch innermost so a shared (Ba==1) anchor tile
    # keeps the same block index across consecutive steps (no redundant DMA);
    # hw_tiles leading keeps a balanced parallel axis for the v7x 2-TC split.
    data_map = lambda t, a, b: (b, a, 0, t, 0)
    anchor_map = data_map if Ba == B else (lambda t, a, b: (0, a, 0, t, 0))

    scores_out, prop_out = pl.pallas_call(
        kernel,
        out_shape=(jax.ShapeDtypeStruct((B, A, C, nr_pad, _LANES), jnp.float32),
                   jax.ShapeDtypeStruct((B, A, 4, nr_pad, _LANES), jnp.float32)),
        grid=(n_tiles, A, B),
        in_specs=[
            pl.BlockSpec((pl.Squeezed(), pl.Squeezed(), C, tile_r, _LANES),
                         data_map),
            pl.BlockSpec((pl.Squeezed(), pl.Squeezed(), 4, tile_r, _LANES),
                         data_map),
            pl.BlockSpec((pl.Squeezed(), pl.Squeezed(), 4, tile_r, _LANES),
                         anchor_map),
        ],
        out_specs=(
            pl.BlockSpec((pl.Squeezed(), pl.Squeezed(), C, tile_r, _LANES),
                         data_map),
            pl.BlockSpec((pl.Squeezed(), pl.Squeezed(), 4, tile_r, _LANES),
                         data_map),
        ),
        compiler_params=pltpu.CompilerParams(
            dimension_semantics=("parallel", "parallel", "parallel"),
            vmem_limit_bytes=vmem_limit),
    )(scores_p, deltas_p, anchors_p)

    if planar_output:
        # Zero extra HBM passes: (B, A, C/4, nr_pad, 128); valid hw is [:HW].
        return scores_out, prop_out

    # ---- single de-planarizing pass per output: n = hw*A + a ordering --------
    scores = jnp.transpose(scores_out.reshape(B, A, C, hw_pad)[..., :HW],
                           (0, 3, 1, 2)).reshape(B, N, C)
    proposals = jnp.transpose(prop_out.reshape(B, A, 4, hw_pad)[..., :HW],
                              (0, 3, 1, 2)).reshape(B, N, 4)
    if out_rows > N:
        pad = out_rows - N
        scores = jnp.pad(scores, ((0, 0), (0, pad), (0, 0)))
        proposals = jnp.pad(proposals, ((0, 0), (0, pad), (0, 0)))
    return scores, proposals.reshape(B, out_rows, 1, 4)


# ----------------------------- pure-JAX reference ----------------------------
def _ref_forward(cls_scores, bbox_preds, anchors, min_num_bboxes, num_classes,
                 use_sigmoid_cls, max_shape):
    B = cls_scores.shape[0]
    scores = jnp.transpose(cls_scores, (0, 2, 3, 1)).reshape(B, -1, num_classes)
    scores = jax.nn.sigmoid(scores) if use_sigmoid_cls else jax.nn.softmax(scores, axis=2)
    deltas = jnp.transpose(bbox_preds, (0, 2, 3, 1)).reshape(B, -1, 4)
    if anchors.ndim == 2:
        anchors = anchors[None]
    anchors = jnp.broadcast_to(anchors, deltas.shape)

    means = jnp.asarray(MEANS, jnp.float32)
    stds = jnp.asarray(STDS, jnp.float32)
    denorm = deltas.reshape(deltas.shape[:-1] + (-1, 4)) * stds + means
    dxy = denorm[..., :2]
    dwh = denorm[..., 2:]
    xy1 = anchors[..., None, :2]
    xy2 = anchors[..., None, 2:]
    pxy = (xy1 + xy2) * 0.5
    pwh = xy2 - xy1
    dxy_wh = pwh * dxy
    max_ratio = abs(math.log(WH_RATIO_CLIP))
    dwh = jnp.clip(dwh, -max_ratio, max_ratio)
    half_gwh = pwh * jnp.exp(dwh) * 0.5
    gxy = pxy + dxy_wh
    xy1 = gxy - half_gwh
    xy2 = gxy + half_gwh
    x1, y1, x2, y2 = xy1[..., 0], xy1[..., 1], xy2[..., 0], xy2[..., 1]
    if max_shape is not None:
        x1 = jnp.clip(x1, 0.0, max_shape[1] - 1.0)
        y1 = jnp.clip(y1, 0.0, max_shape[0] - 1.0)
        x2 = jnp.clip(x2, 0.0, max_shape[1] - 1.0)
        y2 = jnp.clip(y2, 0.0, max_shape[0] - 1.0)
    proposals = jnp.stack([x1, y1, x2, y2], axis=-1).reshape(deltas.shape)
    if scores.shape[1] < min_num_bboxes:
        pad = min_num_bboxes - scores.shape[1]
        scores = jnp.pad(scores, ((0, 0), (0, pad), (0, 0)))
        proposals = jnp.pad(proposals, ((0, 0), (0, pad), (0, 0)))
    return scores, proposals.reshape(B, -1, 1, 4)


# ----------------------------- main ------------------------------------------
if __name__ == "__main__":
    B, A, num_classes, H, W = 2, 3, 4, 16, 16
    N = H * W * A                      # 768 boxes

    key = jax.random.PRNGKey(0)
    k1, k2, k3, k4 = jax.random.split(key, 4)
    cls_scores = jax.random.normal(k1, (B, A * num_classes, H, W), jnp.float32)
    bbox_preds = jax.random.normal(k2, (B, A * 4, H, W), jnp.float32) * 0.5
    ctr = jax.random.uniform(k3, (N, 2), minval=32.0, maxval=224.0)
    wh = jax.random.uniform(k4, (N, 2), minval=8.0, maxval=64.0)
    anchors = jnp.concatenate([ctr - wh * 0.5, ctr + wh * 0.5], axis=-1)  # (N, 4)

    # case 1: sigmoid scores, shared 2-D anchors, padding path (800 > 768)
    min_num1, max_shape1 = 800, (256.0, 256.0)
    s1, p1 = delta_xywh_bbox_coder_forward(
        cls_scores, bbox_preds, anchors, min_num1, num_classes, True, max_shape1)
    jax.block_until_ready((s1, p1))
    rs1, rp1 = _ref_forward(cls_scores, bbox_preds, anchors, min_num1,
                            num_classes, True, max_shape1)
    assert s1.shape == (B, min_num1, num_classes), s1.shape
    assert p1.shape == (B, min_num1, 1, 4), p1.shape
    assert jnp.allclose(s1, rs1, atol=1e-5, rtol=1e-5)
    assert jnp.allclose(p1, rp1, atol=1e-3, rtol=1e-4)

    # case 2: softmax scores, per-batch 3-D anchors, no padding, no border clip
    anchors_b = jnp.stack([anchors, anchors + 1.0], axis=0)   # (B, N, 4)
    min_num2 = 256
    s2, p2 = delta_xywh_bbox_coder_forward(
        cls_scores, bbox_preds, anchors_b, min_num2, num_classes, False, None)
    jax.block_until_ready((s2, p2))
    rs2, rp2 = _ref_forward(cls_scores, bbox_preds, anchors_b, min_num2,
                            num_classes, False, None)
    assert s2.shape == (B, N, num_classes), s2.shape
    assert p2.shape == (B, N, 1, 4), p2.shape
    assert jnp.allclose(s2, rs2, atol=1e-5, rtol=1e-5)
    assert jnp.allclose(p2, rp2, atol=1e-3, rtol=1e-4)

    print("KERNEL_OK")
</pallas_src>

<mosaic_0001>
module attributes {stable_mosaic.version = 11 : i64} {
  func.func @_fused_kernel(%arg0: i32, %arg1: i32, %arg2: i32, %arg3: memref<1x1x4x2x128xf32, #tpu.memory_space<vmem>>, %arg4: memref<1x1x4x2x128xf32, #tpu.memory_space<vmem>>, %arg5: memref<1x1x4x2x128xf32, #tpu.memory_space<vmem>>, %arg6: memref<1x1x4x2x128xf32, #tpu.memory_space<vmem>>, %arg7: memref<1x1x4x2x128xf32, #tpu.memory_space<vmem>>) attributes {dimension_semantics = [#tpu.dimension_semantics<parallel>, #tpu.dimension_semantics<parallel>, #tpu.dimension_semantics<parallel>], iteration_bounds = array<i64: 1, 3, 2>, scalar_prefetch = 0 : i64, scratch_operands = 0 : i64, tpu.core_type = #tpu.core_type<tc>, window_params = [{transform_indices = @transform_0, window_bounds = array<i64: 1, 1, 4, 2, 128>}, {transform_indices = @transform_1, window_bounds = array<i64: 1, 1, 4, 2, 128>}, {transform_indices = @transform_2, window_bounds = array<i64: 1, 1, 4, 2, 128>}, {transform_indices = @transform_3, window_bounds = array<i64: 1, 1, 4, 2, 128>}, {transform_indices = @transform_4, window_bounds = array<i64: 1, 1, 4, 2, 128>}]} {
    %c0 = arith.constant 0 : index
    %c0_0 = arith.constant 0 : index
    %c0_1 = arith.constant 0 : index
    %c0_2 = arith.constant 0 : index
    %c0_3 = arith.constant 0 : index
    %0 = vector.load %arg3[%c0, %c0_0, %c0_1, %c0_2, %c0_3] : memref<1x1x4x2x128xf32, #tpu.memory_space<vmem>>, vector<1x1x4x2x128xf32>
    %1 = vector.shape_cast %0 : vector<1x1x4x2x128xf32> to vector<4x2x128xf32>
    %cst = arith.constant 5.000000e-01 : f32
    %2 = vector.broadcast %cst : f32 to vector<4x2x128xf32>
    %3 = arith.mulf %2, %1 : vector<4x2x128xf32>
    %4 = math.tanh %3 : vector<4x2x128xf32>
    %cst_4 = arith.constant 5.000000e-01 : f32
    %5 = vector.broadcast %cst_4 : f32 to vector<4x2x128xf32>
    %6 = arith.mulf %5, %4 : vector<4x2x128xf32>
    %cst_5 = arith.constant 5.000000e-01 : f32
    %7 = vector.broadcast %cst_5 : f32 to vector<4x2x128xf32>
    %8 = arith.addf %6, %7 : vector<4x2x128xf32>
    %c0_6 = arith.constant 0 : index
    %c0_7 = arith.constant 0 : index
    %c0_8 = arith.constant 0 : index
    %c0_9 = arith.constant 0 : index
    %c0_10 = arith.constant 0 : index
    %9 = vector.load %arg6[%c0_6, %c0_7, %c0_8, %c0_9, %c0_10] : memref<1x1x4x2x128xf32, #tpu.memory_space<vmem>>, vector<1x1x4x2x128xf32>
    %10 = vector.shape_cast %9 : vector<1x1x4x2x128xf32> to vector<4x2x128xf32>
    %11 = vector.shape_cast %8 : vector<4x2x128xf32> to vector<1x1x4x2x128xf32>
    tpu.vector_store %arg6[%c0_6, %c0_7, %c0_8, %c0_9, %c0_10], %11 {strides = array<i32>} : memref<1x1x4x2x128xf32, #tpu.memory_space<vmem>>, vector<1x1x4x2x128xf32>,
    %c0_11 = arith.constant 0 : index
    %c0_12 = arith.constant 0 : index
    %c0_13 = arith.constant 0 : index
    %c0_14 = arith.constant 0 : index
    %c0_15 = arith.constant 0 : index
    %12 = vector.load %arg5[%c0_11, %c0_12, %c0_13, %c0_14, %c0_15] : memref<1x1x4x2x128xf32, #tpu.memory_space<vmem>>, vector<1x1x1x2x128xf32>
    %13 = vector.shape_cast %12 : vector<1x1x1x2x128xf32> to vector<2x128xf32>
    %c0_16 = arith.constant 0 : index
    %c0_17 = arith.constant 0 : index
    %c1 = arith.constant 1 : index
    %c0_18 = arith.constant 0 : index
    %c0_19 = arith.constant 0 : index
    %14 = vector.load %arg5[%c0_16, %c0_17, %c1, %c0_18, %c0_19] : memref<1x1x4x2x128xf32, #tpu.memory_space<vmem>>, vector<1x1x1x2x128xf32>
    %15 = vector.shape_cast %14 : vector<1x1x1x2x128xf32> to vector<2x128xf32>
    %c0_20 = arith.constant 0 : index
    %c0_21 = arith.constant 0 : index
    %c2 = arith.constant 2 : index
    %c0_22 = arith.constant 0 : index
    %c0_23 = arith.constant 0 : index
    %16 = vector.load %arg5[%c0_20, %c0_21, %c2, %c0_22, %c0_23] : memref<1x1x4x2x128xf32, #tpu.memory_space<vmem>>, vector<1x1x1x2x128xf32>
    %17 = vector.shape_cast %16 : vector<1x1x1x2x128xf32> to vector<2x128xf32>
    %c0_24 = arith.constant 0 : index
    %c0_25 = arith.constant 0 : index
    %c3 = arith.constant 3 : index
    %c0_26 = arith.constant 0 : index
    %c0_27 = arith.constant 0 : index
    %18 = vector.load %arg5[%c0_24, %c0_25, %c3, %c0_26, %c0_27] : memref<1x1x4x2x128xf32, #tpu.memory_space<vmem>>, vector<1x1x1x2x128xf32>
    %19 = vector.shape_cast %18 : vector<1x1x1x2x128xf32> to vector<2x128xf32>
    %c0_28 = arith.constant 0 : index
    %c0_29 = arith.constant 0 : index
    %c0_30 = arith.constant 0 : index
    %c0_31 = arith.constant 0 : index
    %c0_32 = arith.constant 0 : index
    %20 = vector.load %arg4[%c0_28, %c0_29, %c0_30, %c0_31, %c0_32] : memref<1x1x4x2x128xf32, #tpu.memory_space<vmem>>, vector<1x1x1x2x128xf32>
    %21 = vector.shape_cast %20 : vector<1x1x1x2x128xf32> to vector<2x128xf32>
    %cst_33 = arith.constant 1.000000e-01 : f32
    %22 = vector.broadcast %cst_33 : f32 to vector<2x128xf32>
    %23 = arith.mulf %21, %22 : vector<2x128xf32>
    %cst_34 = arith.constant 0.000000e+00 : f32
    %24 = vector.broadcast %cst_34 : f32 to vector<2x128xf32>
    %25 = arith.addf %23, %24 : vector<2x128xf32>
    %c0_35 = arith.constant 0 : index
    %c0_36 = arith.constant 0 : index
    %c1_37 = arith.constant 1 : index
    %c0_38 = arith.constant 0 : index
    %c0_39 = arith.constant 0 : index
    %26 = vector.load %arg4[%c0_35, %c0_36, %c1_37, %c0_38, %c0_39] : memref<1x1x4x2x128xf32, #tpu.memory_space<vmem>>, vector<1x1x1x2x128xf32>
    %27 = vector.shape_cast %26 : vector<1x1x1x2x128xf32> to vector<2x128xf32>
    %cst_40 = arith.constant 1.000000e-01 : f32
    %28 = vector.broadcast %cst_40 : f32 to vector<2x128xf32>
    %29 = arith.mulf %27, %28 : vector<2x128xf32>
    %cst_41 = arith.constant 0.000000e+00 : f32
    %30 = vector.broadcast %cst_41 : f32 to vector<2x128xf32>
    %31 = arith.addf %29, %30 : vector<2x128xf32>
    %c0_42 = arith.constant 0 : index
    %c0_43 = arith.constant 0 : index
    %c2_44 = arith.constant 2 : index
    %c0_45 = arith.constant 0 : index
    %c0_46 = arith.constant 0 : index
    %32 = vector.load %arg4[%c0_42, %c0_43, %c2_44, %c0_45, %c0_46] : memref<1x1x4x2x128xf32, #tpu.memory_space<vmem>>, vector<1x1x1x2x128xf32>
    %33 = vector.shape_cast %32 : vector<1x1x1x2x128xf32> to vector<2x128xf32>
    %cst_47 = arith.constant 2.000000e-01 : f32
    %34 = vector.broadcast %cst_47 : f32 to vector<2x128xf32>
    %35 = arith.mulf %33, %34 : vector<2x128xf32>
    %cst_48 = arith.constant 0.000000e+00 : f32
    %36 = vector.broadcast %cst_48 : f32 to vector<2x128xf32>
    %37 = arith.addf %35, %36 : vector<2x128xf32>
    %c0_49 = arith.constant 0 : index
    %c0_50 = arith.constant 0 : index
    %c3_51 = arith.constant 3 : index
    %c0_52 = arith.constant 0 : index
    %c0_53 = arith.constant 0 : index
    %38 = vector.load %arg4[%c0_49, %c0_50, %c3_51, %c0_52, %c0_53] : memref<1x1x4x2x128xf32, #tpu.memory_space<vmem>>, vector<1x1x1x2x128xf32>
    %39 = vector.shape_cast %38 : vector<1x1x1x2x128xf32> to vector<2x128xf32>
    %cst_54 = arith.constant 2.000000e-01 : f32
    %40 = vector.broadcast %cst_54 : f32 to vector<2x128xf32>
    %41 = arith.mulf %39, %40 : vector<2x128xf32>
    %cst_55 = arith.constant 0.000000e+00 : f32
    %42 = vector.broadcast %cst_55 : f32 to vector<2x128xf32>
    %43 = arith.addf %41, %42 : vector<2x128xf32>
    %44 = arith.addf %13, %17 : vector<2x128xf32>
    %cst_56 = arith.constant 5.000000e-01 : f32
    %45 = vector.broadcast %cst_56 : f32 to vector<2x128xf32>
    %46 = arith.mulf %44, %45 : vector<2x128xf32>
    %47 = arith.addf %15, %19 : vector<2x128xf32>
    %cst_57 = arith.constant 5.000000e-01 : f32
    %48 = vector.broadcast %cst_57 : f32 to vector<2x128xf32>
    %49 = arith.mulf %47, %48 : vector<2x128xf32>
    %50 = arith.subf %17, %13 : vector<2x128xf32>
    %51 = arith.subf %19, %15 : vector<2x128xf32>
    %52 = arith.mulf %50, %25 : vector<2x128xf32>
    %53 = arith.addf %46, %52 : vector<2x128xf32>
    %54 = arith.mulf %51, %31 : vector<2x128xf32>
    %55 = arith.addf %49, %54 : vector<2x128xf32>
    %cst_58 = arith.constant -4.13516665 : f32
    %cst_59 = arith.constant 4.13516665 : f32
    %56 = vector.broadcast %cst_58 : f32 to vector<2x128xf32>
    %57 = arith.maximumf %56, %37 : vector<2x128xf32>
    %58 = vector.broadcast %cst_59 : f32 to vector<2x128xf32>
    %59 = arith.minimumf %58, %57 : vector<2x128xf32>
    %60 = math.exp %59 : vector<2x128xf32>
    %61 = arith.mulf %50, %60 : vector<2x128xf32>
    %cst_60 = arith.constant 5.000000e-01 : f32
    %62 = vector.broadcast %cst_60 : f32 to vector<2x128xf32>
    %63 = arith.mulf %61, %62 : vector<2x128xf32>
    %cst_61 = arith.constant -4.13516665 : f32
    %cst_62 = arith.constant 4.13516665 : f32
    %64 = vector.broadcast %cst_61 : f32 to vector<2x128xf32>
    %65 = arith.maximumf %64, %43 : vector<2x128xf32>
    %66 = vector.broadcast %cst_62 : f32 to vector<2x128xf32>
    %67 = arith.minimumf %66, %65 : vector<2x128xf32>
    %68 = math.exp %67 : vector<2x128xf32>
    %69 = arith.mulf %51, %68 : vector<2x128xf32>
    %cst_63 = arith.constant 5.000000e-01 : f32
    %70 = vector.broadcast %cst_63 : f32 to vector<2x128xf32>
    %71 = arith.mulf %69, %70 : vector<2x128xf32>
    %72 = arith.subf %53, %63 : vector<2x128xf32>
    %73 = arith.subf %55, %71 : vector<2x128xf32>
    %74 = arith.addf %53, %63 : vector<2x128xf32>
    %75 = arith.addf %55, %71 : vector<2x128xf32>
    %cst_64 = arith.constant 0.000000e+00 : f32
    %cst_65 = arith.constant 2.550000e+02 : f32
    %76 = vector.broadcast %cst_64 : f32 to vector<2x128xf32>
    %77 = arith.maximumf %76, %72 : vector<2x128xf32>
    %78 = vector.broadcast %cst_65 : f32 to vector<2x128xf32>
    %79 = arith.minimumf %78, %77 : vector<2x128xf32>
    %cst_66 = arith.constant 0.000000e+00 : f32
    %cst_67 = arith.constant 2.550000e+02 : f32
    %80 = vector.broadcast %cst_66 : f32 to vector<2x128xf32>
    %81 = arith.maximumf %80, %73 : vector<2x128xf32>
    %82 = vector.broadcast %cst_67 : f32 to vector<2x128xf32>
    %83 = arith.minimumf %82, %81 : vector<2x128xf32>
    %cst_68 = arith.constant 0.000000e+00 : f32
    %cst_69 = arith.constant 2.550000e+02 : f32
    %84 = vector.broadcast %cst_68 : f32 to vector<2x128xf32>
    %85 = arith.maximumf %84, %74 : vector<2x128xf32>
    %86 = vector.broadcast %cst_69 : f32 to vector<2x128xf32>
    %87 = arith.minimumf %86, %85 : vector<2x128xf32>
    %cst_70 = arith.constant 0.000000e+00 : f32
    %cst_71 = arith.constant 2.550000e+02 : f32
    %88 = vector.broadcast %cst_70 : f32 to vector<2x128xf32>
    %89 = arith.maximumf %88, %75 : vector<2x128xf32>
    %90 = vector.broadcast %cst_71 : f32 to vector<2x128xf32>
    %91 = arith.minimumf %90, %89 : vector<2x128xf32>
    %c0_72 = arith.constant 0 : index
    %c0_73 = arith.constant 0 : index
    %c0_74 = arith.constant 0 : index
    %c0_75 = arith.constant 0 : index
    %c0_76 = arith.constant 0 : index
    %92 = vector.load %arg7[%c0_72, %c0_73, %c0_74, %c0_75, %c0_76] : memref<1x1x4x2x128xf32, #tpu.memory_space<vmem>>, vector<1x1x1x2x128xf32>
    %93 = vector.shape_cast %92 : vector<1x1x1x2x128xf32> to vector<2x128xf32>
    %94 = vector.shape_cast %79 : vector<2x128xf32> to vector<1x1x1x2x128xf32>
    tpu.vector_store %arg7[%c0_72, %c0_73, %c0_74, %c0_75, %c0_76], %94 {strides = array<i32>} : memref<1x1x4x2x128xf32, #tpu.memory_space<vmem>>, vector<1x1x1x2x128xf32>,
    %c0_77 = arith.constant 0 : index
    %c0_78 = arith.constant 0 : index
    %c1_79 = arith.constant 1 : index
    %c0_80 = arith.constant 0 : index
    %c0_81 = arith.constant 0 : index
    %95 = vector.load %arg7[%c0_77, %c0_78, %c1_79, %c0_80, %c0_81] : memref<1x1x4x2x128xf32, #tpu.memory_space<vmem>>, vector<1x1x1x2x128xf32>
    %96 = vector.shape_cast %95 : vector<1x1x1x2x128xf32> to vector<2x128xf32>
    %97 = vector.shape_cast %83 : vector<2x128xf32> to vector<1x1x1x2x128xf32>
    tpu.vector_store %arg7[%c0_77, %c0_78, %c1_79, %c0_80, %c0_81], %97 {strides = array<i32>} : memref<1x1x4x2x128xf32, #tpu.memory_space<vmem>>, vector<1x1x1x2x128xf32>,
    %c0_82 = arith.constant 0 : index
    %c0_83 = arith.constant 0 : index
    %c2_84 = arith.constant 2 : index
    %c0_85 = arith.constant 0 : index
    %c0_86 = arith.constant 0 : index
    %98 = vector.load %arg7[%c0_82, %c0_83, %c2_84, %c0_85, %c0_86] : memref<1x1x4x2x128xf32, #tpu.memory_space<vmem>>, vector<1x1x1x2x128xf32>
    %99 = vector.shape_cast %98 : vector<1x1x1x2x128xf32> to vector<2x128xf32>
    %100 = vector.shape_cast %87 : vector<2x128xf32> to vector<1x1x1x2x128xf32>
    tpu.vector_store %arg7[%c0_82, %c0_83, %c2_84, %c0_85, %c0_86], %100 {strides = array<i32>} : memref<1x1x4x2x128xf32, #tpu.memory_space<vmem>>, vector<1x1x1x2x128xf32>,
    %c0_87 = arith.constant 0 : index
    %c0_88 = arith.constant 0 : index
    %c3_89 = arith.constant 3 : index
    %c0_90 = arith.constant 0 : index
    %c0_91 = arith.constant 0 : index
    %101 = vector.load %arg7[%c0_87, %c0_88, %c3_89, %c0_90, %c0_91] : memref<1x1x4x2x128xf32, #tpu.memory_space<vmem>>, vector<1x1x1x2x128xf32>
    %102 = vector.shape_cast %101 : vector<1x1x1x2x128xf32> to vector<2x128xf32>
    %103 = vector.shape_cast %91 : vector<2x128xf32> to vector<1x1x1x2x128xf32>
    tpu.vector_store %arg7[%c0_87, %c0_88, %c3_89, %c0_90, %c0_91], %103 {strides = array<i32>} : memref<1x1x4x2x128xf32, #tpu.memory_space<vmem>>, vector<1x1x1x2x128xf32>,
    return
  }
  func.func @transform_0(%arg0: i32, %arg1: i32, %arg2: i32) -> (i32, i32, i32, i32, i32) {
    %c0_i32 = arith.constant 0 : i32
    %c0_i32_0 = arith.constant 0 : i32
    %c0_i32_1 = arith.constant 0 : i32
    return %arg2, %arg1, %c0_i32, %arg0, %c0_i32_0 : i32, i32, i32, i32, i32
  }
  func.func @transform_1(%arg0: i32, %arg1: i32, %arg2: i32) -> (i32, i32, i32, i32, i32) {
    %c0_i32 = arith.constant 0 : i32
    %c0_i32_0 = arith.constant 0 : i32
    %c0_i32_1 = arith.constant 0 : i32
    return %arg2, %arg1, %c0_i32, %arg0, %c0_i32_0 : i32, i32, i32, i32, i32
  }
  func.func @transform_2(%arg0: i32, %arg1: i32, %arg2: i32) -> (i32, i32, i32, i32, i32) {
    %c0_i32 = arith.constant 0 : i32
    %c0_i32_0 = arith.constant 0 : i32
    %c0_i32_1 = arith.constant 0 : i32
    %c0_i32_2 = arith.constant 0 : i32
    return %c0_i32, %arg1, %c0_i32_0, %arg0, %c0_i32_1 : i32, i32, i32, i32, i32
  }
  func.func @transform_3(%arg0: i32, %arg1: i32, %arg2: i32) -> (i32, i32, i32, i32, i32) {
    %c0_i32 = arith.constant 0 : i32
    %c0_i32_0 = arith.constant 0 : i32
    %c0_i32_1 = arith.constant 0 : i32
    return %arg2, %arg1, %c0_i32, %arg0, %c0_i32_0 : i32, i32, i32, i32, i32
  }
  func.func @transform_4(%arg0: i32, %arg1: i32, %arg2: i32) -> (i32, i32, i32, i32, i32) {
    %c0_i32 = arith.constant 0 : i32
    %c0_i32_0 = arith.constant 0 : i32
    %c0_i32_1 = arith.constant 0 : i32
    return %arg2, %arg1, %c0_i32, %arg0, %c0_i32_0 : i32, i32, i32, i32, i32
  }
}

</mosaic_0001>

<llo_original>
// kernel: tpu_custom_call.1
$region0: #{tpu_custom_call.1}
  #allocation0 [shape = 'u32[]', space=smem, size = 0x4, offset = 0x4, fixed_abs, tag = 'smem constant byte address 0x4 - core index']
  #allocation1 [shape = 'u32[144,128]{1,0:T(1,128)}', space=vmem, size = 0x12000, scoped, tag = 'internal scratch']
  %s0 = inlined_call_operand.hbm [shape: f32[2,3,4,2,128], index: 0, kind: input, shape index: {}]
  %s1 = inlined_call_operand.hbm [shape: f32[2,3,4,2,128], index: 1, kind: input, shape index: {}]
  %s2 = inlined_call_operand.hbm [shape: f32[1,3,4,2,128], index: 2, kind: input, shape index: {}]
  %s3 = inlined_call_operand.hbm [shape: f32[2,3,4,2,128], index: 3, kind: output, shape index: {0}]
  %s4 = inlined_call_operand.hbm [shape: f32[2,3,4,2,128], index: 4, kind: output, shape index: {1}]
  %5 = xla_tuple %s3, %s4
  %s6 = sld [smem:[#allocation0]]
  $region65: #{tpu_custom_call.1} parent=0
    _
  %s8 = ssub.s32 1, %s6
  %s9 = scalar_select 0, %s8, %s6
  $region1: #{tpu_custom_call.1} parent=0
    #allocation2 [shape = 'u8[8192]{0}', space=vmem, size = 0x2000, scoped, tag = 'input window, operand 0']
    #allocation3 [shape = 's32[2]{0}', space=sflag, size = 0x8, scoped, tag = 'scoped memory for tpu_custom_call.1']
    #allocation4 [shape = 's32[2]{0}', space=sflag, size = 0x8, scoped, tag = 'scoped memory for tpu_custom_call.1']
    #allocation5 [shape = 'u8[8192]{0}', space=vmem, size = 0x2000, scoped, tag = 'input window, operand 1']
    #allocation6 [shape = 's32[2]{0}', space=sflag, size = 0x8, scoped, tag = 'scoped memory for tpu_custom_call.1']
    #allocation7 [shape = 'u8[8192]{0}', space=vmem, size = 0x2000, scoped, tag = 'input window, operand 2']
    #allocation8 [shape = 'u8[8192]{0}', space=vmem, size = 0x2000, scoped, tag = 'output window, operand 0']
    #allocation9 [shape = 'u8[8192]{0}', space=vmem, size = 0x2000, scoped, tag = 'output window, operand 1']
    #allocation10 [shape = 's32[2]{0}', space=sflag, size = 0x8, scoped, tag = 'scoped memory for tpu_custom_call.1']
    %10 = vsyncpa [#allocation3], 0
    %s11 = scalar_lea.sflag [#allocation3], 1
    %12 = vsyncpa %s11, 0
    %13 = vsyncpa [#allocation6], 0
    %s14 = scalar_lea.sflag [#allocation6], 1
    %15 = vsyncpa %s14, 0
    %16 = vsyncpa [#allocation4], 0
    %s17 = scalar_lea.sflag [#allocation4], 1
    %18 = vsyncpa %s17, 0
    %19 = vsyncpa [#allocation10], 0
    %s20 = scalar_lea.sflag [#allocation10], 1
    %21 = vsyncpa %s20, 0
    loop: start=0, step=1, limit=8
    $region2: #{tpu_custom_call.1} parent=1 // loop_pre_header
      _
    $region3: #{tpu_custom_call.1} parent=1 // loop_header
      %s23 = sphi 0, %s27
      %p24 = scmp.ge.s32.totalorder %s23, 8
      %s30 = sphi 0, %s49
      %s31 = sphi 0, %s45
      %s32 = sphi 0, %s41
      %s33 = sphi 0, %s30
      %s34 = sphi 0, %s31
      %s35 = sphi 0, %s32
      %s36 = sphi 0, %s33
      %s37 = sphi 0, %s34
      %s38 = sphi 0, %s35
      %s56 = sphi 0, %s58
      %s59 = sphi 0, %s56
      %s60 = sphi 0, %s59
      %s76 = sphi 0, %s60
      %s86 = sphi 0, %s88
      %s89 = sphi 0, %s86
      %s90 = sphi 0, %s89
      %s106 = sphi 0, %s90
      %s114 = sphi 0, %s116
      %s117 = sphi 0, %s114
      %s118 = sphi 0, %s117
      %s134 = sphi 0, %s118
      %s144 = sphi 0, %s146
      %s147 = sphi 0, %s144
      %s148 = sphi 0, %s147
      %s164 = sphi 0, %s148
      %s174 = sphi 0, %s176
      %s177 = sphi 0, %s174
      %s178 = sphi 0, %s177
      %s194 = sphi 0, %s178
    $region4: #{tpu_custom_call.1} parent=1 // loop_header_branch
      %26 = sbr.rel (%p24) target = $region8
    $region5: #{tpu_custom_call.1} parent=1 // loop_body
      %s28 = ssub.s32 %s23, 1
      %s29 = ssub.s32 %s23, 2
      %s39 = sadd.s32 1, %s32
      %p40 = scmp.ge.s32.totalorder %s39, 2
      %s41 = scalar_select %p40, 0, %s39
      %s42 = sadd.s32 1, %s31
      %s43 = scalar_select %p40, %s42, %s31
      %p44 = scmp.ge.s32.totalorder %s43, 3
      %s45 = scalar_select %p44, 0, %s43
      %s46 = sadd.s32 1, %s30
      %s47 = scalar_select %p44, %s46, %s30
      %p48 = scmp.ge.s32.totalorder %s47, 1
      %s49 = scalar_select %p48, 0, %s47
      %s50 = ssub.s32 %s32, %s41
      %s51 = ssub.s32 %s31, %s45
      %s52 = sor.u32 %s50, %s51
      %s53 = ssub.s32 %s30, %s49
      %s54 = sor.u32 %s52, %s53
      %p55 = scmp.eq.s32.totalorder %s54, 0
      %s57 = sadd.s32 %s56, 1
      %s58 = scalar_select %p55, %s56, %s57
      %p61 = pneg %p55
      %p62 = scmp.eq.s32.totalorder %s23, 5
      %p63 = por %p61, %p62
      %p64 = scmp.ne.s32.totalorder %s56, %s59
      %p65 = scmp.eq.s32.totalorder %s23, 0
      %p66 = por %p64, %p65
      %p67 = scmp.ne.s32.totalorder %s56, %s59
      %p68 = scmp.eq.s32.totalorder %s28, 5
      %p69 = por %p67, %p68
      %p70 = scmp.ne.s32.totalorder %s59, %s60
      %p71 = scmp.eq.s32.totalorder %s28, 0
      %p72 = por %p70, %p71
      %p73 = scmp.ne.s32.totalorder %s59, %s60
      %p74 = scmp.eq.s32.totalorder %s29, 5
      %p75 = por %p73, %p74
      %p77 = scmp.ne.s32.totalorder %s60, %s76
      %p78 = scmp.eq.s32.totalorder %s29, 0
      %p79 = por %p77, %p78
      %s80 = ssub.s32 %s32, %s41
      %s81 = ssub.s32 %s31, %s45
      %s82 = sor.u32 %s80, %s81
      %s83 = ssub.s32 %s30, %s49
      %s84 = sor.u32 %s82, %s83
      %p85 = scmp.eq.s32.totalorder %s84, 0
      %s87 = sadd.s32 %s86, 1
      %s88 = scalar_select %p85, %s86, %s87
      %p91 = pneg %p85
      %p92 = scmp.eq.s32.totalorder %s23, 5
      %p93 = por %p91, %p92
      %p94 = scmp.ne.s32.totalorder %s86, %s89
      %p95 = scmp.eq.s32.totalorder %s23, 0
      %p96 = por %p94, %p95
      %p97 = scmp.ne.s32.totalorder %s86, %s89
      %p98 = scmp.eq.s32.totalorder %s28, 5
      %p99 = por %p97, %p98
      %p100 = scmp.ne.s32.totalorder %s89, %s90
      %p101 = scmp.eq.s32.totalorder %s28, 0
      %p102 = por %p100, %p101
      %p103 = scmp.ne.s32.totalorder %s89, %s90
      %p104 = scmp.eq.s32.totalorder %s29, 5
      %p105 = por %p103, %p104
      %p107 = scmp.ne.s32.totalorder %s90, %s106
      %p108 = scmp.eq.s32.totalorder %s29, 0
      %p109 = por %p107, %p108
      %s110 = ssub.s32 %s31, %s45
      %s111 = ssub.s32 %s30, %s49
      %s112 = sor.u32 %s110, %s111
      %p113 = scmp.eq.s32.totalorder %s112, 0
      %s115 = sadd.s32 %s114, 1
      %s116 = scalar_select %p113, %s114, %s115
      %p119 = pneg %p113
      %p120 = scmp.eq.s32.totalorder %s23, 5
      %p121 = por %p119, %p120
      %p122 = scmp.ne.s32.totalorder %s114, %s117
      %p123 = scmp.eq.s32.totalorder %s23, 0
      %p124 = por %p122, %p123
      %p125 = scmp.ne.s32.totalorder %s114, %s117
      %p126 = scmp.eq.s32.totalorder %s28, 5
      %p127 = por %p125, %p126
      %p128 = scmp.ne.s32.totalorder %s117, %s118
      %p129 = scmp.eq.s32.totalorder %s28, 0
      %p130 = por %p128, %p129
      %p131 = scmp.ne.s32.totalorder %s117, %s118
      %p132 = scmp.eq.s32.totalorder %s29, 5
      %p133 = por %p131, %p132
      %p135 = scmp.ne.s32.totalorder %s118, %s134
      %p136 = scmp.eq.s32.totalorder %s29, 0
      %p137 = por %p135, %p136
      %s138 = ssub.s32 %s32, %s41
      %s139 = ssub.s32 %s31, %s45
      %s140 = sor.u32 %s138, %s139
      %s141 = ssub.s32 %s30, %s49
      %s142 = sor.u32 %s140, %s141
      %p143 = scmp.eq.s32.totalorder %s142, 0
      %s145 = sadd.s32 %s144, 1
      %s146 = scalar_select %p143, %s144, %s145
      %p149 = pneg %p143
      %p150 = scmp.eq.s32.totalorder %s23, 5
      %p151 = por %p149, %p150
      %p152 = scmp.ne.s32.totalorder %s144, %s147
      %p153 = scmp.eq.s32.totalorder %s23, 0
      %p154 = por %p152, %p153
      %p155 = scmp.ne.s32.totalorder %s144, %s147
      %p156 = scmp.eq.s32.totalorder %s28, 5
      %p157 = por %p155, %p156
      %p158 = scmp.ne.s32.totalorder %s147, %s148
      %p159 = scmp.eq.s32.totalorder %s28, 0
      %p160 = por %p158, %p159
      %p161 = scmp.ne.s32.totalorder %s147, %s148
      %p162 = scmp.eq.s32.totalorder %s29, 5
      %p163 = por %p161, %p162
      %p165 = scmp.ne.s32.totalorder %s148, %s164
      %p166 = scmp.eq.s32.totalorder %s29, 0
      %p167 = por %p165, %p166
      %s168 = ssub.s32 %s32, %s41
      %s169 = ssub.s32 %s31, %s45
      %s170 = sor.u32 %s168, %s169
      %s171 = ssub.s32 %s30, %s49
      %s172 = sor.u32 %s170, %s171
      %p173 = scmp.eq.s32.totalorder %s172, 0
      %s175 = sadd.s32 %s174, 1
      %s176 = scalar_select %p173, %s174, %s175
      %p179 = pneg %p173
      %p180 = scmp.eq.s32.totalorder %s23, 5
      %p181 = por %p179, %p180
      %p182 = scmp.ne.s32.totalorder %s174, %s177
      %p183 = scmp.eq.s32.totalorder %s23, 0
      %p184 = por %p182, %p183
      %p185 = scmp.ne.s32.totalorder %s174, %s177
      %p186 = scmp.eq.s32.totalorder %s28, 5
      %p187 = por %p185, %p186
      %p188 = scmp.ne.s32.totalorder %s177, %s178
      %p189 = scmp.eq.s32.totalorder %s28, 0
      %p190 = por %p188, %p189
      %p191 = scmp.ne.s32.totalorder %s177, %s178
      %p192 = scmp.eq.s32.totalorder %s29, 5
      %p193 = por %p191, %p192
      %p195 = scmp.ne.s32.totalorder %s178, %s194
      %p196 = scmp.eq.s32.totalorder %s29, 0
      %p197 = por %p195, %p196
      %p198 = scmp.le.s32.totalorder 1, %s23
      %p199 = scmp.lt.s32.totalorder %s23, 7
      %p200 = pnand %p198, %p199
      %p201 = pneg %p200
      // Predicated region
      $region9: #{tpu_custom_call.1} parent=5 // pred_check
        _
      $region10: #{tpu_custom_call.1} parent=5 // pred_check_branch
        %203 = sbr.rel (%p200) target = $region12
      $region11: #{tpu_custom_call.1} parent=5 // pred_region
        %s204 = ssub.s32 %s23, 1
      $region12: #{tpu_custom_call.1} parent=5 // pred_fallthru
        _
      %p205 = scmp.lt.s32.totalorder %s23, 6
      // Predicated region
      $region13: #{tpu_custom_call.1} parent=5 // pred_check
        %p206 = pneg %p205
      $region14: #{tpu_custom_call.1} parent=5 // pred_check_branch
        %208 = sbr.rel (%p206) target = $region16
      $region15: #{tpu_custom_call.1} parent=5 // pred_region
        // Predicated region
        $region17: #{tpu_custom_call.1} parent=15 // pred_check
          %p209 = pneg %p66
        $region18: #{tpu_custom_call.1} parent=15 // pred_check_branch
          %211 = sbr.rel (%p209) target = $region20
        $region19: #{tpu_custom_call.1} parent=15 // pred_region
          %s212 = sand.u32 %s56, 1
          %s213 = scalar_lea.sflag [#allocation3], %s212
          %s214 = sand.u32 %s56, 1
          %s215 = smul.addr %s214, 8
          %s216 = scalar_lea.vmem [#allocation2], %s215
          %s218 = ssub.s32 128, 128
          %219 = vsyncadd %s213, %s218
          %s220 = smul.addr %s31, 4
          %s221 = sadd.s32 %s30, %s220
          %s222 = smul.addr %s32, 12
          %s223 = sadd.s32 %s221, %s222
          %s224 = smul.addr %s223, 32
          %s225 = scalar_lea.hbm %s0, %s224
          %s226 = sshll.u32 %s216, 4
          %s227 = int_to_ptr.vmem [resolvable:$true] %s226
          %232 = dma.hbm_to_vmem [thread:$0]  %s225, 128, %s227, %s213, 32, 32, 2
        $region20: #{tpu_custom_call.1} parent=15 // pred_fallthru
          _
        // Predicated region
        $region21: #{tpu_custom_call.1} parent=15 // pred_check
          %p233 = pneg %p96
        $region22: #{tpu_custom_call.1} parent=15 // pred_check_branch
          %235 = sbr.rel (%p233) target = $region24
        $region23: #{tpu_custom_call.1} parent=15 // pred_region
          %s236 = sand.u32 %s23, 1
          %s237 = scalar_lea.sflag [#allocation6], %s236
          %s238 = sand.u32 %s86, 1
          %s239 = smul.addr %s238, 8
          %s240 = scalar_lea.vmem [#allocation5], %s239
          %s242 = ssub.s32 128, 128
          %243 = vsyncadd %s237, %s242
          %s244 = smul.addr %s31, 4
          %s245 = sadd.s32 %s30, %s244
          %s246 = smul.addr %s32, 12
          %s247 = sadd.s32 %s245, %s246
          %s248 = smul.addr %s247, 32
          %s249 = scalar_lea.hbm %s1, %s248
          %s250 = sshll.u32 %s240, 4
          %s251 = int_to_ptr.vmem [resolvable:$true] %s250
          %256 = dma.hbm_to_vmem [thread:$0]  %s249, 128, %s251, %s237, 32, 32, 2
        $region24: #{tpu_custom_call.1} parent=15 // pred_fallthru
          _
        // Predicated region
        $region25: #{tpu_custom_call.1} parent=15 // pred_check
          %p257 = pneg %p124
        $region26: #{tpu_custom_call.1} parent=15 // pred_check_branch
          %259 = sbr.rel (%p257) target = $region28
        $region27: #{tpu_custom_call.1} parent=15 // pred_region
          %s260 = sand.u32 %s23, 1
          %s261 = scalar_lea.sflag [#allocation6], %s260
          %s262 = sand.u32 %s114, 1
          %s263 = smul.addr %s262, 8
          %s264 = scalar_lea.vmem [#allocation7], %s263
          %s266 = ssub.s32 128, 128
          %267 = vsyncadd %s261, %s266
          %s268 = smul.addr %s31, 4
          %s269 = sadd.s32 %s30, %s268
          %s270 = smul.addr %s269, 32
          %s271 = scalar_lea.hbm %s2, %s270
          %s272 = sshll.u32 %s264, 4
          %s273 = int_to_ptr.vmem [resolvable:$true] %s272
          %278 = dma.hbm_to_vmem [thread:$0]  %s271, 128, %s273, %s261, 32, 32, 2
        $region28: #{tpu_custom_call.1} parent=15 // pred_fallthru
          _
      $region16: #{tpu_custom_call.1} parent=5 // pred_fallthru
        _
      %p279 = scmp.le.s32.totalorder 1, %s23
      %p280 = scmp.lt.s32.totalorder %s23, 7
      %p281 = pnand %p279, %p280
      %p282 = pneg %p281
      // Predicated region
      $region29: #{tpu_custom_call.1} parent=5 // pred_check
        _
      $region30: #{tpu_custom_call.1} parent=5 // pred_check_branch
        %284 = sbr.rel (%p281) target = $region32
      $region31: #{tpu_custom_call.1} parent=5 // pred_region
        %s285 = ssub.s32 %s23, 1
        %s286 = sand.u32 %s59, 1
        %s287 = scalar_lea.sflag [#allocation3], %s286
        %s288 = sand.u32 %s59, 1
        %s289 = smul.addr %s288, 8
        %s290 = scalar_lea.vmem [#allocation2], %s289
        // Predicated region
        $region33: #{tpu_custom_call.1} parent=31 // pred_check
          %p291 = pneg %p72
        $region34: #{tpu_custom_call.1} parent=31 // pred_check_branch
          %293 = sbr.rel (%p291) target = $region36
        $region35: #{tpu_custom_call.1} parent=31 // pred_region
          %294 = dma.done %s287, 128
        $region36: #{tpu_custom_call.1} parent=31 // pred_fallthru
          _
        %s295 = sand.u32 %s28, 1
        %s296 = scalar_lea.sflag [#allocation6], %s295
        %s297 = sand.u32 %s89, 1
        %s298 = smul.addr %s297, 8
        %s299 = scalar_lea.vmem [#allocation5], %s298
        // Predicated region
        $region37: #{tpu_custom_call.1} parent=31 // pred_check
          %p300 = pneg %p102
        $region38: #{tpu_custom_call.1} parent=31 // pred_check_branch
          %302 = sbr.rel (%p300) target = $region40
        $region39: #{tpu_custom_call.1} parent=31 // pred_region
          %303 = dma.done %s296, 128
        $region40: #{tpu_custom_call.1} parent=31 // pred_fallthru
          _
        %s304 = sand.u32 %s28, 1
        %s305 = scalar_lea.sflag [#allocation6], %s304
        %s306 = sand.u32 %s117, 1
        %s307 = smul.addr %s306, 8
        %s308 = scalar_lea.vmem [#allocation7], %s307
        // Predicated region
        $region41: #{tpu_custom_call.1} parent=31 // pred_check
          %p309 = pneg %p130
        $region42: #{tpu_custom_call.1} parent=31 // pred_check_branch
          %311 = sbr.rel (%p309) target = $region44
        $region43: #{tpu_custom_call.1} parent=31 // pred_region
          %312 = dma.done %s305, 128
        $region44: #{tpu_custom_call.1} parent=31 // pred_fallthru
          _
        %s313 = sand.u32 %s59, 1
        %s314 = scalar_lea.sflag [#allocation3], %s313
        %s315 = sand.u32 %s59, 1
        %s316 = smul.addr %s315, 8
        %s317 = scalar_lea.vmem [#allocation2], %s316
        %p318 = pneg %p72
        %p319 = pneg %p69
        %s320 = sand.u32 %s28, 1
        %s321 = scalar_lea.sflag [#allocation6], %s320
        %s322 = sand.u32 %s89, 1
        %s323 = smul.addr %s322, 8
        %s324 = scalar_lea.vmem [#allocation5], %s323
        %p325 = pneg %p102
        %p326 = pneg %p99
        %s327 = sand.u32 %s28, 1
        %s328 = scalar_lea.sflag [#allocation6], %s327
        %s329 = sand.u32 %s117, 1
        %s330 = smul.addr %s329, 8
        %s331 = scalar_lea.vmem [#allocation7], %s330
        %p332 = pneg %p130
        %p333 = pneg %p127
        %p334 = pneg %p160
        %p335 = pneg %p157
        %s336 = sand.u32 %s147, 1
        %s337 = scalar_lea.sflag [#allocation4], %s336
        %s338 = sand.u32 %s147, 1
        %s339 = smul.addr %s338, 8
        %s340 = scalar_lea.vmem [#allocation8], %s339
        %p341 = pneg %p190
        %p342 = pneg %p187
        %s343 = sand.u32 %s177, 1
        %s344 = scalar_lea.sflag [#allocation10], %s343
        %s345 = sand.u32 %s177, 1
        %s346 = smul.addr %s345, 8
        %s347 = scalar_lea.vmem [#allocation9], %s346
        %v348 = vld [vmem:[%s290] sm:$0x3]
        %v349 = vld [vmem:[%s290 + $0x2] sm:$0x3]
        %v350 = vld [vmem:[%s290 + $0x4] sm:$0x3]
        %v351 = vld [vmem:[%s290 + $0x6] sm:$0x3]
        %v352 = vmul.f32 %v348, 0.5
        %v353 = vmul.f32 %v349, 0.5
        %v354 = vmul.f32 %v350, 0.5
        %v355 = vmul.f32 %v351, 0.5
        %v356 = vtanh.pop %v352
        %v357 = vtanh.pop %v353
        %v358 = vtanh.pop %v354
        %v359 = vtanh.pop %v355
        %v360 = vmul.f32 %v356, 0.5
        %v361 = vmul.f32 %v357, 0.5
        %v362 = vmul.f32 %v358, 0.5
        %v363 = vmul.f32 %v359, 0.5
        %v364 = vadd.f32 %v360, 0.5
        %v365 = vadd.f32 %v361, 0.5
        %v366 = vadd.f32 %v362, 0.5
        %v367 = vadd.f32 %v363, 0.5
        %368 = vst [vmem:[%s340] sm:$0x3] %v364
        %369 = vst [vmem:[%s340 + $0x2] sm:$0x3] %v365
        %370 = vst [vmem:[%s340 + $0x4] sm:$0x3] %v366
        %371 = vst [vmem:[%s340 + $0x6] sm:$0x3] %v367
        %v372 = vld [vmem:[%s308] sm:$0x3]
        %s373 = scalar_lea.vmem %s308, 2 [#allocation7]
        %v374 = vld [vmem:[%s373] sm:$0x3]
        %s375 = scalar_lea.vmem %s308, 4 [#allocation7]
        %v376 = vld [vmem:[%s375] sm:$0x3]
        %s377 = scalar_lea.vmem %s308, 6 [#allocation7]
        %v378 = vld [vmem:[%s377] sm:$0x3]
        %v379 = vld [vmem:[%s299] sm:$0x3]
        %v380 = vmul.f32 %v379, 0.1
        %v381 = vadd.f32 %v380, 0.0
        %s382 = scalar_lea.vmem %s299, 2 [#allocation5]
        %v383 = vld [vmem:[%s382] sm:$0x3]
        %v384 = vmul.f32 %v383, 0.1
        %v385 = vadd.f32 %v384, 0.0
        %s386 = scalar_lea.vmem %s299, 4 [#allocation5]
        %v387 = vld [vmem:[%s386] sm:$0x3]
        %v388 = vmul.f32 %v387, 0.2
        %v389 = vadd.f32 %v388, 0.0
        %s390 = scalar_lea.vmem %s299, 6 [#allocation5]
        %v391 = vld [vmem:[%s390] sm:$0x3]
        %v392 = vmul.f32 %v391, 0.2
        %v393 = vadd.f32 %v392, 0.0
        %v394 = vadd.f32 %v372, %v376
        %v395 = vmul.f32 %v394, 0.5
        %v396 = vadd.f32 %v374, %v378
        %v397 = vmul.f32 %v396, 0.5
        %v398 = vsub.f32 %v376, %v372
        %v399 = vsub.f32 %v378, %v374
        %v400 = vmul.f32 %v398, %v381
        %v401 = vadd.f32 %v395, %v400
        %v402 = vmul.f32 %v399, %v385
        %v403 = vadd.f32 %v397, %v402
        %v404 = vmax.f32 %v389, -4.1351666
        %v405 = vmin.f32 %v404, 4.1351666
        %v406 = vmul.f32 %v405, 1.442695
        %v407 = vpow.pop %v406
        %v408 = vmul.f32 %v398, %v407
        %v409 = vmul.f32 %v408, 0.5
        %v410 = vmax.f32 %v393, -4.1351666
        %v411 = vmin.f32 %v410, 4.1351666
        %v412 = vmul.f32 %v411, 1.442695
        %v413 = vpow.pop %v412
        %v414 = vmul.f32 %v399, %v413
        %v415 = vmul.f32 %v414, 0.5
        %v416 = vsub.f32 %v401, %v409
        %v417 = vsub.f32 %v403, %v415
        %v418 = vadd.f32 %v401, %v409
        %v419 = vadd.f32 %v403, %v415
        %v420 = vmax.f32 %v416, 0.0
        %v421 = vmin.f32 %v420, 255.0
        %v422 = vmax.f32 %v417, 0.0
        %v423 = vmin.f32 %v422, 255.0
        %v424 = vmax.f32 %v418, 0.0
        %v425 = vmin.f32 %v424, 255.0
        %v426 = vmax.f32 %v419, 0.0
        %v427 = vmin.f32 %v426, 255.0
        %428 = vst [vmem:[%s347] sm:$0x3] %v421
        %s429 = scalar_lea.vmem %s347, 2 [#allocation9]
        %430 = vst [vmem:[%s429] sm:$0x3] %v423
        %s431 = scalar_lea.vmem %s347, 4 [#allocation9]
        %432 = vst [vmem:[%s431] sm:$0x3] %v425
        %s433 = scalar_lea.vmem %s347, 6 [#allocation9]
        %434 = vst [vmem:[%s433] sm:$0x3] %v427
        %s435 = sand.u32 %s147, 1
        %s436 = scalar_lea.sflag [#allocation4], %s435
        %s437 = sand.u32 %s147, 1
        %s438 = smul.addr %s437, 8
        %s439 = scalar_lea.vmem [#allocation8], %s438
        %s440 = sand.u32 %s177, 1
        %s441 = scalar_lea.sflag [#allocation10], %s440
        %s442 = sand.u32 %s177, 1
        %s443 = smul.addr %s442, 8
        %s444 = scalar_lea.vmem [#allocation9], %s443
        // Predicated region
        $region45: #{tpu_custom_call.1} parent=31 // pred_check
          %p445 = pneg %p157
        $region46: #{tpu_custom_call.1} parent=31 // pred_check_branch
          %447 = sbr.rel (%p445) target = $region48
        $region47: #{tpu_custom_call.1} parent=31 // pred_region
          %s449 = ssub.s32 128, 128
          %450 = vsyncadd %s436, %s449
          %s451 = smul.addr %s34, 4
          %s452 = sadd.s32 %s33, %s451
          %s453 = smul.addr %s35, 12
          %s454 = sadd.s32 %s452, %s453
          %s455 = smul.addr %s454, 32
          %s456 = scalar_lea.hbm %s3, %s455
          %s457 = sshll.u32 %s439, 4
          %s458 = int_to_ptr.vmem [resolvable:$true] %s457
          %463 = dma.vmem_to_hbm [thread:$0]  %s458, 128, %s456, %s436, 32, 32, 2
        $region48: #{tpu_custom_call.1} parent=31 // pred_fallthru
          _
        // Predicated region
        $region49: #{tpu_custom_call.1} parent=31 // pred_check
          %p464 = pneg %p187
        $region50: #{tpu_custom_call.1} parent=31 // pred_check_branch
          %466 = sbr.rel (%p464) target = $region52
        $region51: #{tpu_custom_call.1} parent=31 // pred_region
          %s468 = ssub.s32 128, 128
          %469 = vsyncadd %s441, %s468
          %s470 = smul.addr %s34, 4
          %s471 = sadd.s32 %s33, %s470
          %s472 = smul.addr %s35, 12
          %s473 = sadd.s32 %s471, %s472
          %s474 = smul.addr %s473, 32
          %s475 = scalar_lea.hbm %s4, %s474
          %s476 = sshll.u32 %s444, 4
          %s477 = int_to_ptr.vmem [resolvable:$true] %s476
          %482 = dma.vmem_to_hbm [thread:$0]  %s477, 128, %s475, %s441, 32, 32, 2
        $region52: #{tpu_custom_call.1} parent=31 // pred_fallthru
          _
      $region32: #{tpu_custom_call.1} parent=5 // pred_fallthru
        _
      %p483 = scmp.le.s32.totalorder 2, %s23
      // Predicated region
      $region53: #{tpu_custom_call.1} parent=5 // pred_check
        %p484 = pneg %p483
      $region54: #{tpu_custom_call.1} parent=5 // pred_check_branch
        %486 = sbr.rel (%p484) target = $region56
      $region55: #{tpu_custom_call.1} parent=5 // pred_region
        %s487 = ssub.s32 %s23, 2
        // Predicated region
        $region57: #{tpu_custom_call.1} parent=55 // pred_check
          %p488 = pneg %p163
        $region58: #{tpu_custom_call.1} parent=55 // pred_check_branch
          %490 = sbr.rel (%p488) target = $region60
        $region59: #{tpu_custom_call.1} parent=55 // pred_region
          %s491 = sand.u32 %s148, 1
          %s492 = scalar_lea.sflag [#allocation4], %s491
          %s493 = sand.u32 %s148, 1
          %s494 = smul.addr %s493, 8
          %s495 = scalar_lea.vmem [#allocation8], %s494
          %496 = dma.done %s492, 128
        $region60: #{tpu_custom_call.1} parent=55 // pred_fallthru
          _
        // Predicated region
        $region61: #{tpu_custom_call.1} parent=55 // pred_check
          %p497 = pneg %p193
        $region62: #{tpu_custom_call.1} parent=55 // pred_check_branch
          %499 = sbr.rel (%p497) target = $region64
        $region63: #{tpu_custom_call.1} parent=55 // pred_region
          %s500 = sand.u32 %s178, 1
          %s501 = scalar_lea.sflag [#allocation10], %s500
          %s502 = sand.u32 %s178, 1
          %s503 = smul.addr %s502, 8
          %s504 = scalar_lea.vmem [#allocation9], %s503
          %505 = dma.done %s501, 128
        $region64: #{tpu_custom_call.1} parent=55 // pred_fallthru
          _
      $region56: #{tpu_custom_call.1} parent=5 // pred_fallthru
        _
    $region6: #{tpu_custom_call.1} parent=1 // loop_footer
      %s27 = sadd.s32 1, %s23
    $region7: #{tpu_custom_call.1} parent=1 // loop_footer_branch
      %22 = sbr.rel target = $region3
    $region8: #{tpu_custom_call.1} parent=1 // loop_exit
      _
    %506 = vsyncpa [#allocation3], 1
    %s507 = scalar_lea.sflag [#allocation3], 1
    %508 = vsyncpa %s507, 1
    %509 = vsyncpa [#allocation6], 1
    %s510 = scalar_lea.sflag [#allocation6], 1
    %511 = vsyncpa %s510, 1
    %512 = vsyncpa [#allocation4], 1
    %s513 = scalar_lea.sflag [#allocation4], 1
    %514 = vsyncpa %s513, 1
    %515 = vsyncpa [#allocation10], 1
    %s516 = scalar_lea.sflag [#allocation10], 1
    %517 = vsyncpa %s516, 1

</llo_original>
